<compile_context>
chip_gen: v7x
topology: tpu7x:2x2x1
jax: 0.10.0
libtpu: 0.0.40
codegen_flags: <defaults>
</compile_context>

<pallas_src>
import math

import jax
import jax.numpy as jnp
from jax.experimental import pallas as pl
from jax.experimental.pallas import tpu as pltpu


_LANE = 128
_TARGET_TILE_BYTES = 4 * 1024 * 1024   # per-buffer tile budget (double-buffered)
_MAX_ROW_TILE = 4096
_MAX_LANE_TILE = 2048                   # multiple of 128
_MIN_PALLAS_BYTES = 64 * 1024           # below this, fused XLA multiply wins


def _round_up(x: int, m: int) -> int:
    return (x + m - 1) // m * m


def _round_down_to(x: int, m: int) -> int:
    return max(m, x // m * m)


def _vmem_limit_bytes() -> int:
    # ~3/4 of physical VMEM, capped at 64 MiB: ~48 MiB on v7x (64 MiB phys),
    # 64 MiB on v5e/v6e (128 MiB phys). Conservative fallback if query fails.
    try:
        phys = int(pltpu.get_tpu_info().vmem_capacity_bytes)
        return min(64 * 1024 * 1024, max(32 * 1024 * 1024, phys * 3 // 4))
    except Exception:
        return 48 * 1024 * 1024


def _multiply_kernel(w_ref, x_ref, o_ref):
    # w_ref: (1, tn) weight tile; x_ref / o_ref: (tb, tn) tiles.
    # Cast to the promoted output dtype inside the kernel (VPU casts are free
    # when HBM-bound); the weight row broadcasts across sublanes in one VPU op.
    f = o_ref.dtype
    o_ref[...] = x_ref[...].astype(f) * w_ref[...].astype(f)


def multiply(weight: jax.Array, x: jax.Array, *,
             min_pallas_bytes: int = _MIN_PALLAS_BYTES) -> jax.Array:
    """weight: (1, N); x: (..., N). Returns the broadcast elementwise product."""
    N = weight.shape[-1]
    assert weight.shape == (1, N), weight.shape
    assert x.ndim >= 2 and x.shape[-1] == N, x.shape

    out_dtype = jnp.result_type(weight.dtype, x.dtype)
    # TODO(synk): jnp.result_type may differ from torch's promotion rules for
    # mixed integer/float inputs; identical for the float case this module uses.

    orig_shape = x.shape
    x2 = x.reshape(-1, N)          # free for contiguous row-major input
    B = x2.shape[0]

    # Tiny inputs: pallas_call launch overhead dominates -> fused XLA op.
    if B * N * jnp.dtype(out_dtype).itemsize < min_pallas_bytes:
        return (weight * x).astype(out_dtype)

    # Small-N row folding: pack k consecutive rows into one lane-dense row so
    # stores are full-width unmasked vst without inflating HBM traffic.
    Bp, Np, xp, wp = B, N, x2, weight
    if N % _LANE != 0:
        k = _LANE // math.gcd(N, _LANE)
        if k > 1 and B % k == 0:
            Bp, Np = B // k, k * N
            xp = x2.reshape(Bp, Np)
            wp = jnp.tile(weight, (1, k))     # tiny (k*N elements)

    itemsizes = [jnp.dtype(d).itemsize for d in (xp.dtype, wp.dtype, out_dtype)]
    sub = {4: 8, 2: 16, 1: 32}[min(itemsizes)]   # sublane packing multiple
    out_isz = jnp.dtype(out_dtype).itemsize

    # Lane tile: whole row when it fits, else a fixed multiple of 128; the
    # cdiv grid + Pallas partial blocks handle any ragged lane tail.
    tn = Np if Np <= _MAX_LANE_TILE else _MAX_LANE_TILE
    # Row tile: fixed size from the byte budget; no divisibility requirement.
    tb = _round_down_to(_TARGET_TILE_BYTES // (tn * out_isz), sub)
    tb = min(tb, _MAX_ROW_TILE)
    if tb >= Bp:
        tb = Bp                      # one full-extent row block (always legal)

    grid = (pl.cdiv(Bp, tb), pl.cdiv(Np, tn))   # rows outermost (megacore)

    out = pl.pallas_call(
        _multiply_kernel,
        out_shape=jax.ShapeDtypeStruct((Bp, Np), out_dtype),
        grid=grid,
        in_specs=[
            pl.BlockSpec((1, tn), lambda i, j: (0, j)),    # weight (stays resident)
            pl.BlockSpec((tb, tn), lambda i, j: (i, j)),   # x
        ],
        out_specs=pl.BlockSpec((tb, tn), lambda i, j: (i, j)),
        compiler_params=pltpu.CompilerParams(
            dimension_semantics=("parallel", "parallel"),
            vmem_limit_bytes=_vmem_limit_bytes(),
        ),
    )(wp, xp)

    return out.reshape(orig_shape)


if __name__ == "__main__":
    key = jax.random.PRNGKey(0)
    k_w, k_x, k_x2, k_w3, k_x3, k_w4 = jax.random.split(key, 6)

    # Shapes implied by the module: weight (1, N) broadcast over rows of x.
    N, B = 32, 8
    weight = jax.random.uniform(k_w, (1, N), dtype=jnp.float32)
    x = jax.random.normal(k_x, (B, N), dtype=jnp.float32)

    # 1) Tiny shape, forced through the Pallas path (exercises the
    #    (8, 32) -> (2, 128) lane-dense row folding).
    out = jax.block_until_ready(multiply(weight, x, min_pallas_bytes=0))
    ref = weight * x
    assert out.shape == ref.shape and out.dtype == ref.dtype
    assert jnp.allclose(out, ref, atol=1e-6, rtol=1e-6)

    # 2) Same tiny shape through the default path (XLA short-circuit).
    out_sc = jax.block_until_ready(multiply(weight, x))
    assert jnp.allclose(out_sc, ref, atol=1e-6, rtol=1e-6)

    # 3) Ragged rows, non-foldable N (cdiv grid, full-extent odd-sized block).
    B3, N3 = 301, 96
    w3 = jax.random.uniform(k_w3, (1, N3), dtype=jnp.float32)
    x3 = jax.random.normal(k_x3, (B3, N3), dtype=jnp.float32)
    out3 = jax.block_until_ready(multiply(w3, x3, min_pallas_bytes=0))
    assert jnp.allclose(out3, w3 * x3, atol=1e-6, rtol=1e-6)

    # 4) Wide rows with a ragged lane tail + mixed dtypes (in-kernel cast,
    #    partial lane block on the second grid step).
    B4, N4 = 64, 2176
    w4 = jax.random.uniform(k_w4, (1, N4), dtype=jnp.float32)
    x4 = jax.random.normal(k_x2, (B4, N4), dtype=jnp.bfloat16)
    out4 = jax.block_until_ready(multiply(w4, x4, min_pallas_bytes=0))
    ref4 = w4 * x4
    assert out4.dtype == ref4.dtype
    assert jnp.allclose(out4, ref4, atol=1e-6, rtol=1e-6)

    print("KERNEL_OK")
</pallas_src>

<mosaic_0001>
module attributes {stable_mosaic.version = 11 : i64} {
  func.func @_multiply_kernel(%arg0: i32, %arg1: i32, %arg2: memref<1x128xf32, #tpu.memory_space<vmem>>, %arg3: memref<2x128xf32, #tpu.memory_space<vmem>>, %arg4: memref<2x128xf32, #tpu.memory_space<vmem>>) attributes {dimension_semantics = [#tpu.dimension_semantics<parallel>, #tpu.dimension_semantics<parallel>], iteration_bounds = array<i64: 1, 1>, scalar_prefetch = 0 : i64, scratch_operands = 0 : i64, tpu.core_type = #tpu.core_type<tc>, window_params = [{transform_indices = @transform_0, window_bounds = array<i64: 1, 128>}, {transform_indices = @transform_1, window_bounds = array<i64: 2, 128>}, {transform_indices = @transform_2, window_bounds = array<i64: 2, 128>}]} {
    %c0 = arith.constant 0 : index
    %c0_0 = arith.constant 0 : index
    %0 = vector.load %arg3[%c0, %c0_0] : memref<2x128xf32, #tpu.memory_space<vmem>>, vector<2x128xf32>
    %c0_1 = arith.constant 0 : index
    %c0_2 = arith.constant 0 : index
    %1 = vector.load %arg2[%c0_1, %c0_2] : memref<1x128xf32, #tpu.memory_space<vmem>>, vector<1x128xf32>
    %2 = vector.broadcast %1 : vector<1x128xf32> to vector<2x128xf32>
    %3 = arith.mulf %0, %2 : vector<2x128xf32>
    %c0_3 = arith.constant 0 : index
    %c0_4 = arith.constant 0 : index
    %4 = vector.load %arg4[%c0_3, %c0_4] : memref<2x128xf32, #tpu.memory_space<vmem>>, vector<2x128xf32>
    tpu.vector_store %arg4[%c0_3, %c0_4], %3 {strides = array<i32>} : memref<2x128xf32, #tpu.memory_space<vmem>>, vector<2x128xf32>,
    return
  }
  func.func @transform_0(%arg0: i32, %arg1: i32) -> (i32, i32) {
    %c0_i32 = arith.constant 0 : i32
    %c0_i32_0 = arith.constant 0 : i32
    return %c0_i32, %arg1 : i32, i32
  }
  func.func @transform_1(%arg0: i32, %arg1: i32) -> (i32, i32) {
    %c0_i32 = arith.constant 0 : i32
    return %arg0, %arg1 : i32, i32
  }
  func.func @transform_2(%arg0: i32, %arg1: i32) -> (i32, i32) {
    %c0_i32 = arith.constant 0 : i32
    return %arg0, %arg1 : i32, i32
  }
}

</mosaic_0001>

<llo_original>
// kernel: tpu_custom_call.1
$region0: #{tpu_custom_call.1}
  #allocation0 [shape = 'u32[]', space=smem, size = 0x4, offset = 0x4, fixed_abs, tag = 'smem constant byte address 0x4 - core index']
  #allocation1 [shape = 'u32[144,128]{1,0:T(1,128)}', space=vmem, size = 0x12000, scoped, tag = 'internal scratch']
  %s0 = inlined_call_operand.hbm [shape: f32[1,128], index: 0, kind: input, shape index: {}]
  %s1 = inlined_call_operand.vmem [shape: f32[2,128], index: 1, kind: input, shape index: {}]
  %s2 = inlined_call_operand.hbm [shape: f32[2,128], index: 2, kind: output, shape index: {}]
  %s3 = sld [smem:[#allocation0]]
  $region22: #{tpu_custom_call.1} parent=0
    _
  %s5 = ssub.s32 1, %s3
  %s6 = scalar_select 0, %s5, %s3
  $region1: #{tpu_custom_call.1} parent=0
    #allocation2 [shape = 'u8[512]{0}', space=vmem, size = 0x400, scoped, tag = 'input window, operand 0, single buffered']
    #allocation3 [shape = 's32[1]{0}', space=sflag, size = 0x4, scoped, tag = 'scoped memory for tpu_custom_call.1']
    #allocation4 [shape = 's32[1]{0}', space=sflag, size = 0x4, scoped, tag = 'scoped memory for tpu_custom_call.1']
    #allocation5 [shape = 'u8[1024]{0}', space=vmem, size = 0x400, scoped, tag = 'output window, operand 0, single buffered']
    %7 = vsyncpa [#allocation3], 0
    %8 = vsyncpa [#allocation4], 0
    // Predicated region
    $region2: #{tpu_custom_call.1} parent=1 // pred_check
      _
    $region3: #{tpu_custom_call.1} parent=1 // pred_check_branch
      %10 = sbr.rel (0) target = $region5
    $region4: #{tpu_custom_call.1} parent=1 // pred_region
      %s12 = ssub.s32 16, 16
      %13 = vsyncadd [#allocation3], %s12
      %s15 = sshll.u32 [#allocation2], 4
      %s16 = int_to_ptr.vmem [resolvable:$true] %s15
      %18 = dma.hbm_to_vmem [thread:$0]  %s0, 16, %s16, [#allocation3]
    $region5: #{tpu_custom_call.1} parent=1 // pred_fallthru
      _
    // Predicated region
    $region6: #{tpu_custom_call.1} parent=1 // pred_check
      _
    $region7: #{tpu_custom_call.1} parent=1 // pred_check_branch
      %20 = sbr.rel (0) target = $region9
    $region8: #{tpu_custom_call.1} parent=1 // pred_region
      _
    $region9: #{tpu_custom_call.1} parent=1 // pred_fallthru
      _
    // Predicated region
    $region10: #{tpu_custom_call.1} parent=1 // pred_check
      _
    $region11: #{tpu_custom_call.1} parent=1 // pred_check_branch
      %22 = sbr.rel (0) target = $region13
    $region12: #{tpu_custom_call.1} parent=1 // pred_region
      %23 = dma.done [#allocation3], 16
    $region13: #{tpu_custom_call.1} parent=1 // pred_fallthru
      _
    %v24 = vld [vmem:[%s1] sm:$0x3]
    %v25 = vld [vmem:[#allocation2] sm:$0x1]
    %v27 = vlaneseq
    %v28 = vshrl.u32 %v27, 7
    %v29 = vsub.s32 0, %v28
    %v30 = vrot.slane %v25, %v29
    %v32 = vmul.f32 %v24, %v30
    %33 = vst [vmem:[#allocation5] sm:$0x3] %v32
    // Predicated region
    $region14: #{tpu_custom_call.1} parent=1 // pred_check
      _
    $region15: #{tpu_custom_call.1} parent=1 // pred_check_branch
      %35 = sbr.rel (0) target = $region17
    $region16: #{tpu_custom_call.1} parent=1 // pred_region
      %s37 = ssub.s32 32, 32
      %38 = vsyncadd [#allocation4], %s37
      %s40 = sshll.u32 [#allocation5], 4
      %s41 = int_to_ptr.vmem [resolvable:$true] %s40
      %43 = dma.vmem_to_hbm [thread:$0]  %s41, 32, %s2, [#allocation4]
    $region17: #{tpu_custom_call.1} parent=1 // pred_fallthru
      _
    // Predicated region
    $region18: #{tpu_custom_call.1} parent=1 // pred_check
      _
    $region19: #{tpu_custom_call.1} parent=1 // pred_check_branch
      %45 = sbr.rel (0) target = $region21
    $region20: #{tpu_custom_call.1} parent=1 // pred_region
      %46 = dma.done [#allocation4], 32
    $region21: #{tpu_custom_call.1} parent=1 // pred_fallthru
      _
    %47 = vsyncpa [#allocation3], 1
    %48 = vsyncpa [#allocation4], 1

</llo_original>
